<compile_context>
chip_gen: v7x
topology: tpu7x:2x2x1
jax: 0.10.0
libtpu: 0.0.40
codegen_flags: <defaults>
</compile_context>

<pallas_src>
import functools
import math

import jax
import jax.numpy as jnp
import numpy as np
from jax.experimental import pallas as pl
from jax.experimental.pallas import tpu as pltpu


def _round_up(x, m):
    return (x + m - 1) // m * m


def _cmix_compute(x, xx, tmk, omk, tmr, omr,
                  wk_ref, wv_ref, wr_ref, out_ref, kv_acc):
    """Shared body. x/xx: (RT, Cp) f32. Weights: bf16. kv_acc: (RT, Cp) f32."""
    f = pl.program_id(1)

    # key path for this F-chunk: mix (f32) -> bf16 matmul -> relu^2 -> bf16
    xk = (x * tmk + xx * omk).astype(jnp.bfloat16)
    k = jnp.dot(xk, wk_ref[...], preferred_element_type=jnp.float32)
    k = jnp.square(jnp.maximum(k, 0.0)).astype(jnp.bfloat16)
    kv_part = jnp.dot(k, wv_ref[...], preferred_element_type=jnp.float32)

    @pl.when(f == 0)
    def _():
        kv_acc[...] = jnp.zeros_like(kv_acc)

    kv_acc[...] += kv_part

    @pl.when(f == pl.num_programs(1) - 1)
    def _():
        # receptance is independent of the F-chunk: compute once at finalize.
        xr = (x * tmr + xx * omr).astype(jnp.bfloat16)
        r = jax.nn.sigmoid(
            jnp.dot(xr, wr_ref[...], preferred_element_type=jnp.float32))
        out_ref[...] = (r * kv_acc[...]).astype(out_ref.dtype)


def _cmix_kernel_shift(x_ref, tmk_ref, omk_ref, tmr_ref, omr_ref,
                       wk_ref, wv_ref, wr_ref, out_ref, kv_acc,
                       *, seq_len, row_tile):
    """Time shift computed in-kernel (XLU roll + sequence-start mask)."""
    x = x_ref[...]                                      # (RT, Cp) f32
    shifted = pltpu.roll(x, 1, 0)                       # shifted[i] = x[i-1]
    row0 = pl.program_id(0) * row_tile
    rid = row0 + jax.lax.broadcasted_iota(jnp.int32, (row_tile, 1), 0)
    keep = (rid % seq_len != 0).astype(x.dtype)         # zero at each seq start
    xx = shifted * keep
    _cmix_compute(x, xx, tmk_ref[...], omk_ref[...], tmr_ref[...], omr_ref[...],
                  wk_ref, wv_ref, wr_ref, out_ref, kv_acc)


def _cmix_kernel_ext(x_ref, xx_ref, tmk_ref, omk_ref, tmr_ref, omr_ref,
                     wk_ref, wv_ref, wr_ref, out_ref, kv_acc):
    """Variant for an externally supplied xx (module's optional arg)."""
    _cmix_compute(x_ref[...], xx_ref[...],
                  tmk_ref[...], omk_ref[...], tmr_ref[...], omr_ref[...],
                  wk_ref, wv_ref, wr_ref, out_ref, kv_acc)


def rwkv_channel_mix(x, time_mix_k, time_mix_r, w_key, w_value, w_receptance,
                     xx=None, *, row_target=256, f_tile=512):
    """x: (B, T, C). nn.Linear weights are (out, in); they are transposed here."""
    B, T, C = x.shape
    F_dim = w_key.shape[0]
    out_dtype = x.dtype
    f32, bf16 = jnp.float32, jnp.bfloat16

    # ---- padded / tiled geometry -------------------------------------------
    Cp = _round_up(C, 128)
    Fp = _round_up(F_dim, 128)
    if Fp <= f_tile:
        TF = Fp
    else:
        TF = _round_up(f_tile, 128)
        Fp = _round_up(Fp, TF)
    n_f = Fp // TF

    rows = B * T
    base = math.lcm(T, 8)                 # sequence-aligned & sublane-aligned
    RT = base * max(1, row_target // base)
    RT = min(RT, _round_up(rows, base))   # don't over-pad tiny inputs
    rows_p = _round_up(rows, RT)
    n_rows = rows_p // RT

    # ---- operand prep (pad to lane-dense shapes, weights -> bf16) ----------
    x2 = jnp.pad(jnp.asarray(x, f32).reshape(rows, C),
                 ((0, rows_p - rows), (0, Cp - C)))

    tmk = jnp.pad(jnp.asarray(time_mix_k, f32).reshape(-1),
                  (0, Cp - C)).reshape(1, Cp)
    tmr = jnp.pad(jnp.asarray(time_mix_r, f32).reshape(-1),
                  (0, Cp - C)).reshape(1, Cp)
    omk = 1.0 - tmk                       # hoisted (1 - time_mix_*) terms
    omr = 1.0 - tmr

    wk_t = jnp.pad(jnp.asarray(w_key, f32).T,
                   ((0, Cp - C), (0, Fp - F_dim))).astype(bf16)      # (Cp, Fp)
    wv_t = jnp.pad(jnp.asarray(w_value, f32).T,
                   ((0, Fp - F_dim), (0, Cp - C))).astype(bf16)      # (Fp, Cp)
    wr_t = jnp.pad(jnp.asarray(w_receptance, f32).T,
                   ((0, Cp - C), (0, Cp - C))).astype(bf16)          # (Cp, Cp)

    # ---- specs --------------------------------------------------------------
    row_spec = pl.BlockSpec((RT, Cp), lambda i, f: (i, 0))
    vec_spec = pl.BlockSpec((1, Cp), lambda i, f: (0, 0))
    wk_spec = pl.BlockSpec((Cp, TF), lambda i, f: (0, f))
    wv_spec = pl.BlockSpec((TF, Cp), lambda i, f: (f, 0))
    wr_spec = pl.BlockSpec((Cp, Cp), lambda i, f: (0, 0))

    if xx is None:
        kernel = functools.partial(_cmix_kernel_shift, seq_len=T, row_tile=RT)
        in_specs = [row_spec, vec_spec, vec_spec, vec_spec, vec_spec,
                    wk_spec, wv_spec, wr_spec]
        operands = (x2, tmk, omk, tmr, omr, wk_t, wv_t, wr_t)
        n_act_streams = 1
    else:
        xx2 = jnp.pad(jnp.asarray(xx, f32).reshape(rows, C),
                      ((0, rows_p - rows), (0, Cp - C)))
        kernel = _cmix_kernel_ext
        in_specs = [row_spec, row_spec, vec_spec, vec_spec, vec_spec, vec_spec,
                    wk_spec, wv_spec, wr_spec]
        operands = (x2, xx2, tmk, omk, tmr, omr, wk_t, wv_t, wr_t)
        n_act_streams = 2

    # ---- VMEM budget (double-buffered streams + resident weights + scratch) -
    out_isz = jnp.dtype(out_dtype).itemsize
    est = (2 * n_act_streams * RT * Cp * 4        # activation block(s)
           + 2 * RT * Cp * out_isz                # output block
           + 2 * (Cp * TF + TF * Cp) * 2          # streamed weight chunks
           + Cp * Cp * 2                          # resident receptance weight
           + RT * Cp * 4                          # f32 kv accumulator
           + 8 * Cp * 4)                          # mix vectors
    vmem_limit = int(min(max(est * 3 // 2 + (2 << 20), 32 << 20), 64 << 20))

    cost = pl.CostEstimate(
        flops=2 * rows_p * (2 * Cp * Fp + Cp * Cp),
        transcendentals=rows_p * Cp,
        bytes_accessed=(n_act_streams * rows_p * Cp * 4
                        + rows_p * Cp * out_isz
                        + (2 * Cp * Fp + Cp * Cp) * 2),
    )

    out = pl.pallas_call(
        kernel,
        out_shape=jax.ShapeDtypeStruct((rows_p, Cp), out_dtype),
        grid_spec=pltpu.PrefetchScalarGridSpec(
            num_scalar_prefetch=0,
            grid=(n_rows, n_f),
            in_specs=in_specs,
            out_specs=pl.BlockSpec((RT, Cp), lambda i, f: (i, 0)),
            scratch_shapes=[pltpu.VMEM((RT, Cp), jnp.float32)],
        ),
        compiler_params=pltpu.CompilerParams(
            dimension_semantics=("parallel", "arbitrary"),
            vmem_limit_bytes=vmem_limit),
        cost_estimate=cost,
    )(*operands)

    return out[:rows, :C].reshape(B, T, C)


# --------------------------------------------------------------------------- #
# Parameter init + references
# --------------------------------------------------------------------------- #
def make_params(n_embd, dim_ffn, layer_id, n_layer, key):
    """Deterministic parameter init mirroring the module's __init__ shapes."""
    ratio_1_to_almost0 = 1.0 - layer_id / n_layer
    ddd = jnp.arange(n_embd, dtype=jnp.float32) / n_embd
    time_mix_k = jnp.power(ddd, ratio_1_to_almost0)   # (C,)
    time_mix_r = jnp.power(ddd, ratio_1_to_almost0)   # (C,)

    k1, k2, k3 = jax.random.split(key, 3)
    # nn.Linear weight shape is (out_features, in_features)
    w_key = jax.random.normal(k1, (dim_ffn, n_embd), jnp.float32) / math.sqrt(n_embd)
    w_receptance = jax.random.normal(k2, (n_embd, n_embd), jnp.float32) / math.sqrt(n_embd)
    w_value = jax.random.normal(k3, (n_embd, dim_ffn), jnp.float32) / math.sqrt(dim_ffn)
    return time_mix_k, time_mix_r, w_key, w_value, w_receptance


def reference_forward(x, time_mix_k, time_mix_r, w_key, w_value, w_receptance):
    """Exact f32 reference matching the PyTorch module's forward."""
    xx = jnp.pad(x, ((0, 0), (1, 0), (0, 0)))[:, :-1, :]
    xk = x * time_mix_k + xx * (1 - time_mix_k)
    xr = x * time_mix_r + xx * (1 - time_mix_r)
    k = xk @ w_key.T
    k = jnp.square(jnp.maximum(k, 0.0))
    kv = k @ w_value.T
    return jax.nn.sigmoid(xr @ w_receptance.T) * kv


def reference_forward_matched(x, time_mix_k, time_mix_r,
                              w_key, w_value, w_receptance):
    """Reference mirroring the kernel precision (bf16 matmul in, f32 accum)."""
    bf16, f32 = jnp.bfloat16, jnp.float32
    xx = jnp.pad(x, ((0, 0), (1, 0), (0, 0)))[:, :-1, :]
    xk = (x * time_mix_k + xx * (1 - time_mix_k)).astype(bf16)
    xr = (x * time_mix_r + xx * (1 - time_mix_r)).astype(bf16)
    k = jnp.dot(xk, w_key.astype(bf16).T, preferred_element_type=f32)
    k = jnp.square(jnp.maximum(k, 0.0)).astype(bf16)
    kv = jnp.dot(k, w_value.astype(bf16).T, preferred_element_type=f32)
    r = jax.nn.sigmoid(jnp.dot(xr, w_receptance.astype(bf16).T,
                               preferred_element_type=f32))
    return (r * kv).astype(x.dtype)


if __name__ == "__main__":
    # Small shapes implied by the module: d_model=32, ffn ratio 2.0, seq=8, batch=2
    B, T, C = 2, 8, 32
    dim_ffn = 2 * C
    layer_id, n_layer = 0, 4

    key = jax.random.PRNGKey(0)
    kx, kp = jax.random.split(key)
    x = jax.random.normal(kx, (B, T, C), jnp.float32)

    time_mix_k, time_mix_r, w_key, w_value, w_receptance = make_params(
        C, dim_ffn, layer_id, n_layer, kp)

    out = rwkv_channel_mix(x, time_mix_k, time_mix_r,
                           w_key, w_value, w_receptance)
    out = jax.block_until_ready(out)

    # Tight check against a reference mirroring the kernel's bf16-matmul /
    # f32-accumulate precision (verifies structure + time-shift semantics).
    ref_matched = reference_forward_matched(x, time_mix_k, time_mix_r,
                                            w_key, w_value, w_receptance)
    np.testing.assert_allclose(np.asarray(out), np.asarray(ref_matched),
                               rtol=1e-2, atol=1e-2)

    # Looser check against the exact f32 module reference (bf16 matmul inputs
    # with f32 accumulation; tolerance per perf-review guidance).
    ref_f32 = reference_forward(x, time_mix_k, time_mix_r,
                                w_key, w_value, w_receptance)
    np.testing.assert_allclose(np.asarray(out), np.asarray(ref_f32),
                               rtol=5e-2, atol=5e-2)
    print("KERNEL_OK")
</pallas_src>

<mosaic_0001>
module attributes {stable_mosaic.version = 11 : i64} {
  func.func @_cmix_kernel_shift(%arg0: i32, %arg1: i32, %arg2: memref<16x128xf32, #tpu.memory_space<vmem>>, %arg3: memref<1x128xf32, #tpu.memory_space<vmem>>, %arg4: memref<1x128xf32, #tpu.memory_space<vmem>>, %arg5: memref<1x128xf32, #tpu.memory_space<vmem>>, %arg6: memref<1x128xf32, #tpu.memory_space<vmem>>, %arg7: memref<128x128xbf16, #tpu.memory_space<vmem>>, %arg8: memref<128x128xbf16, #tpu.memory_space<vmem>>, %arg9: memref<128x128xbf16, #tpu.memory_space<vmem>>, %arg10: memref<16x128xf32, #tpu.memory_space<vmem>>, %arg11: memref<16x128xf32, #tpu.memory_space<vmem>>) attributes {dimension_semantics = [#tpu.dimension_semantics<parallel>, #tpu.dimension_semantics<arbitrary>], iteration_bounds = array<i64: 1, 1>, scalar_prefetch = 0 : i64, scratch_operands = 1 : i64, tpu.core_type = #tpu.core_type<tc>, window_params = [{transform_indices = @transform_0, window_bounds = array<i64: 16, 128>}, {pipeline_mode = #tpu.pipeline_mode<synchronous>, transform_indices = @transform_1, window_bounds = array<i64: 1, 128>}, {pipeline_mode = #tpu.pipeline_mode<synchronous>, transform_indices = @transform_2, window_bounds = array<i64: 1, 128>}, {pipeline_mode = #tpu.pipeline_mode<synchronous>, transform_indices = @transform_3, window_bounds = array<i64: 1, 128>}, {pipeline_mode = #tpu.pipeline_mode<synchronous>, transform_indices = @transform_4, window_bounds = array<i64: 1, 128>}, {transform_indices = @transform_5, window_bounds = array<i64: 128, 128>}, {transform_indices = @transform_6, window_bounds = array<i64: 128, 128>}, {pipeline_mode = #tpu.pipeline_mode<synchronous>, transform_indices = @transform_7, window_bounds = array<i64: 128, 128>}, {transform_indices = @transform_8, window_bounds = array<i64: 16, 128>}]} {
    %c0 = arith.constant 0 : index
    %c0_0 = arith.constant 0 : index
    %0 = vector.load %arg2[%c0, %c0_0] : memref<16x128xf32, #tpu.memory_space<vmem>>, vector<16x128xf32>
    %c1_i32 = arith.constant 1 : i32
    %1 = tpu.dynamic_rotate %0 by %c1_i32 dim 0 : vector<16x128xf32>, i32 -> vector<16x128xf32>
    %c16_i32 = arith.constant 16 : i32
    %2 = arith.muli %arg0, %c16_i32 : i32
    %3 = tpu.iota {dimensions = array<i32: 0>} : vector<16x1xi32>
    %4 = vector.broadcast %2 : i32 to vector<16x1xi32>
    %5 = arith.addi %4, %3 : vector<16x1xi32>
    %c8_i32 = arith.constant 8 : i32
    %c0_i32 = arith.constant 0 : i32
    %6 = arith.cmpi eq, %c8_i32, %c0_i32 : i32
    %c1_i32_1 = arith.constant 1 : i32
    %7 = arith.select %6, %c1_i32_1, %c8_i32 : i32
    %8 = vector.broadcast %7 : i32 to vector<16x1xi32>
    %9 = arith.remsi %5, %8 : vector<16x1xi32>
    %c0_i32_2 = arith.constant 0 : i32
    %10 = vector.broadcast %c0_i32_2 : i32 to vector<16x1xi32>
    %11 = arith.cmpi ne, %9, %10 : vector<16x1xi32>
    %c0_i32_3 = arith.constant 0 : i32
    %12 = vector.broadcast %c0_i32_3 : i32 to vector<16x1xi32>
    %13 = arith.cmpi slt, %9, %12 : vector<16x1xi32>
    %c0_i32_4 = arith.constant 0 : i32
    %14 = arith.cmpi slt, %7, %c0_i32_4 : i32
    %15 = vector.broadcast %14 : i1 to vector<16x1xi1>
    %16 = vector.broadcast %15 : vector<16x1xi1> to vector<16x1xi1>
    %17 = arith.xori %13, %16 : vector<16x1xi1>
    %18 = arith.andi %17, %11 : vector<16x1xi1>
    %19 = vector.broadcast %7 : i32 to vector<16x1xi32>
    %20 = arith.addi %9, %19 : vector<16x1xi32>
    %21 = arith.select %18, %20, %9 : vector<16x1xi1>, vector<16x1xi32>
    %c0_i32_5 = arith.constant 0 : i32
    %22 = vector.broadcast %c0_i32_5 : i32 to vector<16x1xi32>
    %23 = arith.cmpi ne, %21, %22 : vector<16x1xi32>
    %24 = arith.extui %23 : vector<16x1xi1> to vector<16x1xi32>
    %25 = arith.sitofp %24 : vector<16x1xi32> to vector<16x1xf32>
    %26 = vector.broadcast %25 : vector<16x1xf32> to vector<16x128xf32>
    %27 = arith.mulf %1, %26 : vector<16x128xf32>
    %c0_6 = arith.constant 0 : index
    %c0_7 = arith.constant 0 : index
    %28 = vector.load %arg3[%c0_6, %c0_7] : memref<1x128xf32, #tpu.memory_space<vmem>>, vector<1x128xf32>
    %c0_8 = arith.constant 0 : index
    %c0_9 = arith.constant 0 : index
    %29 = vector.load %arg4[%c0_8, %c0_9] : memref<1x128xf32, #tpu.memory_space<vmem>>, vector<1x128xf32>
    %c0_10 = arith.constant 0 : index
    %c0_11 = arith.constant 0 : index
    %30 = vector.load %arg5[%c0_10, %c0_11] : memref<1x128xf32, #tpu.memory_space<vmem>>, vector<1x128xf32>
    %c0_12 = arith.constant 0 : index
    %c0_13 = arith.constant 0 : index
    %31 = vector.load %arg6[%c0_12, %c0_13] : memref<1x128xf32, #tpu.memory_space<vmem>>, vector<1x128xf32>
    %32 = vector.broadcast %28 : vector<1x128xf32> to vector<16x128xf32>
    %33 = arith.mulf %0, %32 : vector<16x128xf32>
    %34 = vector.broadcast %29 : vector<1x128xf32> to vector<16x128xf32>
    %35 = arith.mulf %27, %34 : vector<16x128xf32>
    %36 = arith.addf %33, %35 : vector<16x128xf32>
    %37 = arith.truncf %36 : vector<16x128xf32> to vector<16x128xbf16>
    %c0_14 = arith.constant 0 : index
    %c0_15 = arith.constant 0 : index
    %38 = vector.load %arg7[%c0_14, %c0_15] : memref<128x128xbf16, #tpu.memory_space<vmem>>, vector<128x128xbf16>
    %cst = arith.constant dense<0.000000e+00> : vector<16x128xf32>
    %39 = tpu.matmul %37, %38, %cst {dimension_numbers = #tpu.dot_dimension_numbers<[1], [0], [0], [1], [0, 0, 1, 1], [], []>} : vector<16x128xbf16>, vector<128x128xbf16>, vector<16x128xf32> -> vector<16x128xf32>
    %cst_16 = arith.constant 0.000000e+00 : f32
    %40 = vector.broadcast %cst_16 : f32 to vector<16x128xf32>
    %41 = arith.maximumf %39, %40 : vector<16x128xf32>
    %42 = arith.mulf %41, %41 : vector<16x128xf32>
    %43 = arith.truncf %42 : vector<16x128xf32> to vector<16x128xbf16>
    %c0_17 = arith.constant 0 : index
    %c0_18 = arith.constant 0 : index
    %44 = vector.load %arg8[%c0_17, %c0_18] : memref<128x128xbf16, #tpu.memory_space<vmem>>, vector<128x128xbf16>
    %cst_19 = arith.constant dense<0.000000e+00> : vector<16x128xf32>
    %45 = tpu.matmul %43, %44, %cst_19 {dimension_numbers = #tpu.dot_dimension_numbers<[1], [0], [0], [1], [0, 0, 1, 1], [], []>} : vector<16x128xbf16>, vector<128x128xbf16>, vector<16x128xf32> -> vector<16x128xf32>
    %c0_i32_20 = arith.constant 0 : i32
    %46 = arith.cmpi eq, %arg1, %c0_i32_20 : i32
    %47 = arith.extui %46 : i1 to i32
    %c0_i32_21 = arith.constant 0 : i32
    %48 = arith.cmpi ne, %47, %c0_i32_21 : i32
    scf.if %48 {
      %cst_28 = arith.constant 0.000000e+00 : f32
      %55 = vector.broadcast %cst_28 : f32 to vector<16x128xf32>
      %c0_29 = arith.constant 0 : index
      %c0_30 = arith.constant 0 : index
      %56 = vector.load %arg11[%c0_29, %c0_30] : memref<16x128xf32, #tpu.memory_space<vmem>>, vector<16x128xf32>
      tpu.vector_store %arg11[%c0_29, %c0_30], %55 {strides = array<i32>} : memref<16x128xf32, #tpu.memory_space<vmem>>, vector<16x128xf32>,
    } else {
    }
    %c0_22 = arith.constant 0 : index
    %c0_23 = arith.constant 0 : index
    %49 = vector.load %arg11[%c0_22, %c0_23] : memref<16x128xf32, #tpu.memory_space<vmem>>, vector<16x128xf32>
    %50 = arith.addf %49, %45 : vector<16x128xf32>
    %c0_24 = arith.constant 0 : index
    %c0_25 = arith.constant 0 : index
    %51 = vector.load %arg11[%c0_24, %c0_25] : memref<16x128xf32, #tpu.memory_space<vmem>>, vector<16x128xf32>
    tpu.vector_store %arg11[%c0_24, %c0_25], %50 {strides = array<i32>} : memref<16x128xf32, #tpu.memory_space<vmem>>, vector<16x128xf32>,
    %c0_i32_26 = arith.constant 0 : i32
    %52 = arith.cmpi eq, %arg1, %c0_i32_26 : i32
    %53 = arith.extui %52 : i1 to i32
    %c0_i32_27 = arith.constant 0 : i32
    %54 = arith.cmpi ne, %53, %c0_i32_27 : i32
    scf.if %54 {
      %55 = vector.broadcast %30 : vector<1x128xf32> to vector<16x128xf32>
      %56 = arith.mulf %0, %55 : vector<16x128xf32>
      %57 = vector.broadcast %31 : vector<1x128xf32> to vector<16x128xf32>
      %58 = arith.mulf %27, %57 : vector<16x128xf32>
      %59 = arith.addf %56, %58 : vector<16x128xf32>
      %60 = arith.truncf %59 : vector<16x128xf32> to vector<16x128xbf16>
      %c0_28 = arith.constant 0 : index
      %c0_29 = arith.constant 0 : index
      %61 = vector.load %arg9[%c0_28, %c0_29] : memref<128x128xbf16, #tpu.memory_space<vmem>>, vector<128x128xbf16>
      %cst_30 = arith.constant dense<0.000000e+00> : vector<16x128xf32>
      %62 = tpu.matmul %60, %61, %cst_30 {dimension_numbers = #tpu.dot_dimension_numbers<[1], [0], [0], [1], [0, 0, 1, 1], [], []>} : vector<16x128xbf16>, vector<128x128xbf16>, vector<16x128xf32> -> vector<16x128xf32>
      %63 = arith.negf %62 : vector<16x128xf32>
      %64 = math.exp %63 : vector<16x128xf32>
      %cst_31 = arith.constant 1.000000e+00 : f32
      %65 = vector.broadcast %cst_31 : f32 to vector<16x128xf32>
      %66 = arith.addf %65, %64 : vector<16x128xf32>
      %67 = arith.divf %65, %66 : vector<16x128xf32>
      %c0_32 = arith.constant 0 : index
      %c0_33 = arith.constant 0 : index
      %68 = vector.load %arg11[%c0_32, %c0_33] : memref<16x128xf32, #tpu.memory_space<vmem>>, vector<16x128xf32>
      %69 = arith.mulf %67, %68 : vector<16x128xf32>
      %c0_34 = arith.constant 0 : index
      %c0_35 = arith.constant 0 : index
      %70 = vector.load %arg10[%c0_34, %c0_35] : memref<16x128xf32, #tpu.memory_space<vmem>>, vector<16x128xf32>
      tpu.vector_store %arg10[%c0_34, %c0_35], %69 {strides = array<i32>} : memref<16x128xf32, #tpu.memory_space<vmem>>, vector<16x128xf32>,
    } else {
    }
    return
  }
  func.func @transform_0(%arg0: i32, %arg1: i32) -> (i32, i32) {
    %c0_i32 = arith.constant 0 : i32
    %c0_i32_0 = arith.constant 0 : i32
    return %arg0, %c0_i32 : i32, i32
  }
  func.func @transform_1(%arg0: i32, %arg1: i32) -> (i32, i32) {
    %c0_i32 = arith.constant 0 : i32
    %c0_i32_0 = arith.constant 0 : i32
    %c0_i32_1 = arith.constant 0 : i32
    return %c0_i32, %c0_i32_0 : i32, i32
  }
  func.func @transform_2(%arg0: i32, %arg1: i32) -> (i32, i32) {
    %c0_i32 = arith.constant 0 : i32
    %c0_i32_0 = arith.constant 0 : i32
    %c0_i32_1 = arith.constant 0 : i32
    return %c0_i32, %c0_i32_0 : i32, i32
  }
  func.func @transform_3(%arg0: i32, %arg1: i32) -> (i32, i32) {
    %c0_i32 = arith.constant 0 : i32
    %c0_i32_0 = arith.constant 0 : i32
    %c0_i32_1 = arith.constant 0 : i32
    return %c0_i32, %c0_i32_0 : i32, i32
  }
  func.func @transform_4(%arg0: i32, %arg1: i32) -> (i32, i32) {
    %c0_i32 = arith.constant 0 : i32
    %c0_i32_0 = arith.constant 0 : i32
    %c0_i32_1 = arith.constant 0 : i32
    return %c0_i32, %c0_i32_0 : i32, i32
  }
  func.func @transform_5(%arg0: i32, %arg1: i32) -> (i32, i32) {
    %c0_i32 = arith.constant 0 : i32
    %c0_i32_0 = arith.constant 0 : i32
    return %c0_i32, %arg1 : i32, i32
  }
  func.func @transform_6(%arg0: i32, %arg1: i32) -> (i32, i32) {
    %c0_i32 = arith.constant 0 : i32
    %c0_i32_0 = arith.constant 0 : i32
    return %arg1, %c0_i32 : i32, i32
  }
  func.func @transform_7(%arg0: i32, %arg1: i32) -> (i32, i32) {
    %c0_i32 = arith.constant 0 : i32
    %c0_i32_0 = arith.constant 0 : i32
    %c0_i32_1 = arith.constant 0 : i32
    return %c0_i32, %c0_i32_0 : i32, i32
  }
  func.func @transform_8(%arg0: i32, %arg1: i32) -> (i32, i32) {
    %c0_i32 = arith.constant 0 : i32
    %c0_i32_0 = arith.constant 0 : i32
    return %arg0, %c0_i32 : i32, i32
  }
}

</mosaic_0001>

<llo_original>
// kernel: tpu_custom_call.1
$region0: #{tpu_custom_call.1}
  #allocation0 [shape = 'u32[]', space=smem, size = 0x4, offset = 0x4, fixed_abs, tag = 'smem constant byte address 0x4 - core index']
  #allocation1 [shape = 'u32[144,128]{1,0:T(1,128)}', space=vmem, size = 0x12000, scoped, tag = 'internal scratch']
  #allocation2 [shape = 'f32[16,128]{1,0:T(8,128)}', space=vmem, size = 0x2000, scoped, tag = 'scratch operand']
  %s0 = inlined_call_operand.hbm [shape: f32[16,128], index: 0, kind: input, shape index: {}]
  %s1 = inlined_call_operand.vmem [shape: f32[1,128], index: 1, kind: input, shape index: {}]
  %s2 = inlined_call_operand.vmem [shape: f32[1,128], index: 2, kind: input, shape index: {}]
  %s3 = inlined_call_operand.vmem [shape: f32[1,128], index: 3, kind: input, shape index: {}]
  %s4 = inlined_call_operand.vmem [shape: f32[1,128], index: 4, kind: input, shape index: {}]
  %s5 = inlined_call_operand.hbm [shape: bf16[128,128], index: 5, kind: input, shape index: {}]
  %s6 = inlined_call_operand.hbm [shape: bf16[128,128], index: 6, kind: input, shape index: {}]
  %s7 = inlined_call_operand.hbm [shape: bf16[128,128], index: 7, kind: input, shape index: {}]
  %s8 = inlined_call_operand.hbm [shape: f32[16,128], index: 8, kind: output, shape index: {}]
  %s9 = sld [smem:[#allocation0]]
  $region66: #{tpu_custom_call.1} parent=0
    _
  %s11 = ssub.s32 1, %s9
  %s12 = scalar_select 0, %s11, %s9
  $region1: #{tpu_custom_call.1} parent=0
    #allocation3 [shape = 'u8[8192]{0}', space=vmem, size = 0x2000, scoped, tag = 'input window, operand 0, single buffered']
    #allocation4 [shape = 's32[1]{0}', space=sflag, size = 0x4, scoped, tag = 'scoped memory for tpu_custom_call.1']
    #allocation5 [shape = 's32[1]{0}', space=sflag, size = 0x4, scoped, tag = 'scoped memory for tpu_custom_call.1']
    #allocation6 [shape = 'u8[32768]{0}', space=vmem, size = 0x8000, scoped, tag = 'input window, operand 5, single buffered']
    #allocation7 [shape = 's32[1]{0}', space=sflag, size = 0x4, scoped, tag = 'scoped memory for tpu_custom_call.1']
    #allocation8 [shape = 'u8[32768]{0}', space=vmem, size = 0x8000, scoped, tag = 'input window, operand 6, single buffered']
    #allocation9 [shape = 'u8[32768]{0}', space=vmem, size = 0x8000, scoped, tag = 'input window, operand 7, single buffered']
    #allocation10 [shape = 's32[1]{0}', space=sflag, size = 0x4, scoped, tag = 'scoped memory for tpu_custom_call.1']
    #allocation11 [shape = 'u8[8192]{0}', space=vmem, size = 0x2000, scoped, tag = 'output window, operand 0, single buffered']
    %13 = vsyncpa [#allocation4], 0
    %14 = vsyncpa [#allocation7], 0
    %15 = vsyncpa [#allocation10], 0
    %16 = vsyncpa [#allocation5], 0
    // Predicated region
    $region2: #{tpu_custom_call.1} parent=1 // pred_check
      _
    $region3: #{tpu_custom_call.1} parent=1 // pred_check_branch
      %18 = sbr.rel (0) target = $region5
    $region4: #{tpu_custom_call.1} parent=1 // pred_region
      %s20 = ssub.s32 256, 256
      %21 = vsyncadd [#allocation4], %s20
      %s22 = sshll.u32 [#allocation3], 4
      %s23 = int_to_ptr.vmem [resolvable:$true] %s22
      %28 = dma.hbm_to_vmem [thread:$0]  %s0, 256, %s23, [#allocation4], 128, 128, 8
    $region5: #{tpu_custom_call.1} parent=1 // pred_fallthru
      _
    // Predicated region
    $region6: #{tpu_custom_call.1} parent=1 // pred_check
      _
    $region7: #{tpu_custom_call.1} parent=1 // pred_check_branch
      %30 = sbr.rel (0) target = $region9
    $region8: #{tpu_custom_call.1} parent=1 // pred_region
      _
    $region9: #{tpu_custom_call.1} parent=1 // pred_fallthru
      _
    // Predicated region
    $region10: #{tpu_custom_call.1} parent=1 // pred_check
      _
    $region11: #{tpu_custom_call.1} parent=1 // pred_check_branch
      %32 = sbr.rel (0) target = $region13
    $region12: #{tpu_custom_call.1} parent=1 // pred_region
      _
    $region13: #{tpu_custom_call.1} parent=1 // pred_fallthru
      _
    // Predicated region
    $region14: #{tpu_custom_call.1} parent=1 // pred_check
      _
    $region15: #{tpu_custom_call.1} parent=1 // pred_check_branch
      %34 = sbr.rel (0) target = $region17
    $region16: #{tpu_custom_call.1} parent=1 // pred_region
      _
    $region17: #{tpu_custom_call.1} parent=1 // pred_fallthru
      _
    // Predicated region
    $region18: #{tpu_custom_call.1} parent=1 // pred_check
      _
    $region19: #{tpu_custom_call.1} parent=1 // pred_check_branch
      %36 = sbr.rel (0) target = $region21
    $region20: #{tpu_custom_call.1} parent=1 // pred_region
      _
    $region21: #{tpu_custom_call.1} parent=1 // pred_fallthru
      _
    // Predicated region
    $region22: #{tpu_custom_call.1} parent=1 // pred_check
      _
    $region23: #{tpu_custom_call.1} parent=1 // pred_check_branch
      %38 = sbr.rel (0) target = $region25
    $region24: #{tpu_custom_call.1} parent=1 // pred_region
      %s40 = ssub.s32 1024, 1024
      %41 = vsyncadd [#allocation7], %s40
      %s42 = sshll.u32 [#allocation6], 4
      %s43 = int_to_ptr.vmem [resolvable:$true] %s42
      %48 = dma.hbm_to_vmem [thread:$0]  %s5, 1024, %s43, [#allocation7], 64, 64, 4
    $region25: #{tpu_custom_call.1} parent=1 // pred_fallthru
      _
    // Predicated region
    $region26: #{tpu_custom_call.1} parent=1 // pred_check
      _
    $region27: #{tpu_custom_call.1} parent=1 // pred_check_branch
      %50 = sbr.rel (0) target = $region29
    $region28: #{tpu_custom_call.1} parent=1 // pred_region
      %s52 = ssub.s32 1024, 1024
      %53 = vsyncadd [#allocation7], %s52
      %s54 = sshll.u32 [#allocation8], 4
      %s55 = int_to_ptr.vmem [resolvable:$true] %s54
      %60 = dma.hbm_to_vmem [thread:$0]  %s6, 1024, %s55, [#allocation7], 64, 64, 4
    $region29: #{tpu_custom_call.1} parent=1 // pred_fallthru
      _
    // Predicated region
    $region30: #{tpu_custom_call.1} parent=1 // pred_check
      _
    $region31: #{tpu_custom_call.1} parent=1 // pred_check_branch
      %62 = sbr.rel (0) target = $region33
    $region32: #{tpu_custom_call.1} parent=1 // pred_region
      %s64 = ssub.s32 1024, 1024
      %65 = vsyncadd [#allocation10], %s64
      %s66 = sshll.u32 [#allocation9], 4
      %s67 = int_to_ptr.vmem [resolvable:$true] %s66
      %72 = dma.hbm_to_vmem [thread:$0]  %s7, 1024, %s67, [#allocation10], 64, 64, 4
    $region33: #{tpu_custom_call.1} parent=1 // pred_fallthru
      _
    // Predicated region
    $region34: #{tpu_custom_call.1} parent=1 // pred_check
      _
    $region35: #{tpu_custom_call.1} parent=1 // pred_check_branch
      %74 = sbr.rel (0) target = $region37
    $region36: #{tpu_custom_call.1} parent=1 // pred_region
      %75 = dma.done [#allocation4], 256
    $region37: #{tpu_custom_call.1} parent=1 // pred_fallthru
      _
    // Predicated region
    $region38: #{tpu_custom_call.1} parent=1 // pred_check
      _
    $region39: #{tpu_custom_call.1} parent=1 // pred_check_branch
      %77 = sbr.rel (0) target = $region41
    $region40: #{tpu_custom_call.1} parent=1 // pred_region
      %78 = dma.done [#allocation7], 1024
    $region41: #{tpu_custom_call.1} parent=1 // pred_fallthru
      _
    // Predicated region
    $region42: #{tpu_custom_call.1} parent=1 // pred_check
      _
    $region43: #{tpu_custom_call.1} parent=1 // pred_check_branch
      %80 = sbr.rel (0) target = $region45
    $region44: #{tpu_custom_call.1} parent=1 // pred_region
      %81 = dma.done [#allocation7], 1024
    $region45: #{tpu_custom_call.1} parent=1 // pred_fallthru
      _
    // Predicated region
    $region46: #{tpu_custom_call.1} parent=1 // pred_check
      _
    $region47: #{tpu_custom_call.1} parent=1 // pred_check_branch
      %83 = sbr.rel (0) target = $region49
    $region48: #{tpu_custom_call.1} parent=1 // pred_region
      %84 = dma.done [#allocation10], 1024
    $region49: #{tpu_custom_call.1} parent=1 // pred_fallthru
      _
    %v86 = vld [vmem:[#allocation3] sm:$0xff]
    %v87 = vld [vmem:[#allocation3 + $0x8] sm:$0xff]
    %v88 = vrot.slane %v86, 7
    %v89 = vrot.slane %v87, 7
    %v90 = vlaneseq
    %v91 = vshrl.u32 %v90, 7
    %vm92 = vcmp.lt.s32.totalorder %v91, 1
    %v93 = vsel %vm92, %v88, %v89
    %v94 = vsel %vm92, %v89, %v88
    %s95 = smul.u32 0, 16
    %v96 = vadd.s32 %v91, 8
    %v97 = vstv %s95
    %v98 = vadd.s32 %v97, %v91
    %v99 = vadd.s32 %v97, %v96
    %vm100 = vcmp.lt.s32.totalorder %v98, 0
    %v101 = vsub.s32 0, %v98
    %v102 = vsel %vm100, %v101, %v98
    %v103 = vshrl.u32 %v102, 3
    %v104 = vand.u32 %v102, 7
    %v105 = vsub.s32 0, %v104
    %v106 = vsel %vm100, %v105, %v104
    %vm107 = vcmp.lt.s32.totalorder %v99, 0
    %v108 = vsub.s32 0, %v99
    %v109 = vsel %vm107, %v108, %v99
    %v110 = vshrl.u32 %v109, 3
    %v111 = vand.u32 %v109, 7
    %v112 = vsub.s32 0, %v111
    %v113 = vsel %vm107, %v112, %v111
    %vm114 = vcmp.ne.s32.totalorder %v106, 0
    %vm115 = vcmp.ne.s32.totalorder %v113, 0
    %vm116 = vcmp.lt.s32.totalorder %v106, 0
    %vm117 = vcmp.lt.s32.totalorder %v113, 0
    %vm118 = vmand %vm116, %vm114
    %vm119 = vmand %vm117, %vm115
    %v120 = vadd.s32 %v106, 8
    %v121 = vadd.s32 %v113, 8
    %v122 = vsel %vm118, %v120, %v106
    %v123 = vsel %vm119, %v121, %v113
    %vm124 = vcmp.ne.s32.totalorder %v122, 0
    %vm125 = vcmp.ne.s32.totalorder %v123, 0
    %v126 = vsel %vm124, 1, 0
    %v127 = vsel %vm125, 1, 0
    %v128 = vcvt.s32.f32 %v126
    %v129 = vcvt.s32.f32 %v127
    %v130 = vmul.f32 %v94, %v128
    %v131 = vmul.f32 %v93, %v129
    %v132 = vld [vmem:[%s1] sm:$0x1]
    %v133 = vld [vmem:[%s2] sm:$0x1]
    %v134 = vld [vmem:[%s3] sm:$0x1]
    %v135 = vld [vmem:[%s4] sm:$0x1]
    %v137 = vlaneseq
    %v138 = vshrl.u32 %v137, 7
    %v139 = vsub.s32 0, %v138
    %v140 = vrot.slane %v132, %v139
    %v142 = vmul.f32 %v86, %v140
    %v143 = vmul.f32 %v87, %v140
    %v145 = vlaneseq
    %v146 = vshrl.u32 %v145, 7
    %v147 = vsub.s32 0, %v146
    %v148 = vrot.slane %v133, %v147
    %v150 = vmul.f32 %v130, %v148
    %v151 = vmul.f32 %v131, %v148
    %v152 = vadd.f32 %v142, %v150
    %v153 = vadd.f32 %v143, %v151
    %v154 = vpack.c.bf16 %v153, %v152
    %v155 = vld [vmem:[#allocation6] sm:$0xf]
    %v156 = vld [vmem:[#allocation6 + $0x4] sm:$0xf]
    %v157 = vld [vmem:[#allocation6 + $0x8] sm:$0xf]
    %v158 = vld [vmem:[#allocation6 + $0xc] sm:$0xf]
    %v159 = vld [vmem:[#allocation6 + $0x10] sm:$0xf]
    %v160 = vld [vmem:[#allocation6 + $0x14] sm:$0xf]
    %v161 = vld [vmem:[#allocation6 + $0x18] sm:$0xf]
    %v162 = vld [vmem:[#allocation6 + $0x1c] sm:$0xf]
    %v163 = vld [vmem:[#allocation6 + $0x20] sm:$0xf]
    %v164 = vld [vmem:[#allocation6 + $0x24] sm:$0xf]
    %v165 = vld [vmem:[#allocation6 + $0x28] sm:$0xf]
    %v166 = vld [vmem:[#allocation6 + $0x2c] sm:$0xf]
    %v167 = vld [vmem:[#allocation6 + $0x30] sm:$0xf]
    %v168 = vld [vmem:[#allocation6 + $0x34] sm:$0xf]
    %v169 = vld [vmem:[#allocation6 + $0x38] sm:$0xf]
    %v170 = vld [vmem:[#allocation6 + $0x3c] sm:$0xf]
    %v187 = vunpack.c.l.b16 %v155
    %v188 = vunpack.c.l.b16 %v156
    %v189 = vunpack.c.l.b16 %v157
    %v190 = vunpack.c.l.b16 %v158
    %v191 = vunpack.c.l.b16 %v159
    %v192 = vunpack.c.l.b16 %v160
    %v193 = vunpack.c.l.b16 %v161
    %v194 = vunpack.c.l.b16 %v162
    %v195 = vunpack.c.l.b16 %v163
    %v196 = vunpack.c.l.b16 %v164
    %v197 = vunpack.c.l.b16 %v165
    %v198 = vunpack.c.l.b16 %v166
    %v199 = vunpack.c.l.b16 %v167
    %v200 = vunpack.c.l.b16 %v168
    %v201 = vunpack.c.l.b16 %v169
    %v202 = vunpack.c.l.b16 %v170
    %v203 = vpack.c.b16 %v188, %v187
    %v204 = vpack.c.b16 %v190, %v189
    %v205 = vpack.c.b16 %v192, %v191
    %v206 = vpack.c.b16 %v194, %v193
    %v207 = vpack.c.b16 %v196, %v195
    %v208 = vpack.c.b16 %v198, %v197
    %v209 = vpack.c.b16 %v200, %v199
    %v210 = vpack.c.b16 %v202, %v201
    %219 = vmatprep.subr.bf16.mxu0 0
    %220 = vmatpush1.bf16.msra.mxu0 %v203
    %221 = vmatprep.subr.bf16.mxu0 0
    %222 = vmatpush1.bf16.msra.mxu0 %v204
    %223 = vmatprep.subr.bf16.mxu0 0
    %224 = vmatpush1.bf16.msra.mxu0 %v205
    %225 = vmatprep.subr.bf16.mxu0 0
    %226 = vmatpush1.bf16.msra.mxu0 %v206
    %227 = vmatprep.subr.bf16.mxu0 0
    %228 = vmatpush1.bf16.msra.mxu0 %v207
    %229 = vmatprep.subr.bf16.mxu0 0
    %230 = vmatpush1.bf16.msra.mxu0 %v208
    %231 = vmatprep.subr.bf16.mxu0 0
    %232 = vmatpush1.bf16.msra.mxu0 %v209
    %233 = vmatprep.subr.bf16.mxu0 0
    %234 = vmatpush1.bf16.msra.mxu0 %v210
    %235 = vmatprep.subr.bf16.mxu0 0
    %236 = vmatpush1.bf16.msra.mxu0 0
    %237 = vmatprep.subr.bf16.mxu0 0
    %238 = vmatpush1.bf16.msra.mxu0 0
    %239 = vmatprep.subr.bf16.mxu0 0
    %240 = vmatpush1.bf16.msra.mxu0 0
    %241 = vmatprep.subr.bf16.mxu0 0
    %242 = vmatpush1.bf16.msra.mxu0 0
    %243 = vmatprep.subr.bf16.mxu0 0
    %244 = vmatpush1.bf16.msra.mxu0 0
    %245 = vmatprep.subr.bf16.mxu0 0
    %246 = vmatpush1.bf16.msra.mxu0 0
    %247 = vmatprep.subr.bf16.mxu0 0
    %248 = vmatpush1.bf16.msra.mxu0 0
    %249 = vmatprep.subr.bf16.mxu0 0
    %250 = vmatpush1.bf16.msra.mxu0 0
    %251 = vmatprep.mubr.bf16.mxu0 0
    %252 = vmatmul.mubr.bf16.gmra.mrb[0].mxu0 %v154
    %v253 = vpop.f32.mrb[0].mxu0
    %v254 = vadd.f32 0.0, %v253
    %v255 = vpop.f32.mrb[0].mxu0
    %v256 = vpop.f32.mrb[0].mxu0
    %v257 = vadd.f32 0.0, %v256
    %v258 = vpop.f32.mrb[0].mxu0
    %259 = vdwg.mxu0
    %v260 = vmax.f32 %v254, 0.0
    %v261 = vmax.f32 %v257, 0.0
    %v262 = vmul.f32 %v260, %v260
    %v263 = vmul.f32 %v261, %v261
    %v264 = vpack.c.bf16 %v263, %v262
    %v265 = vld [vmem:[#allocation8] sm:$0xf]
    %v266 = vld [vmem:[#allocation8 + $0x4] sm:$0xf]
    %v267 = vld [vmem:[#allocation8 + $0x8] sm:$0xf]
    %v268 = vld [vmem:[#allocation8 + $0xc] sm:$0xf]
    %v269 = vld [vmem:[#allocation8 + $0x10] sm:$0xf]
    %v270 = vld [vmem:[#allocation8 + $0x14] sm:$0xf]
    %v271 = vld [vmem:[#allocation8 + $0x18] sm:$0xf]
    %v272 = vld [vmem:[#allocation8 + $0x1c] sm:$0xf]
    %v273 = vld [vmem:[#allocation8 + $0x20] sm:$0xf]
    %v274 = vld [vmem:[#allocation8 + $0x24] sm:$0xf]
    %v275 = vld [vmem:[#allocation8 + $0x28] sm:$0xf]
    %v276 = vld [vmem:[#allocation8 + $0x2c] sm:$0xf]
    %v277 = vld [vmem:[#allocation8 + $0x30] sm:$0xf]
    %v278 = vld [vmem:[#allocation8 + $0x34] sm:$0xf]
    %v279 = vld [vmem:[#allocation8 + $0x38] sm:$0xf]
    %v280 = vld [vmem:[#allocation8 + $0x3c] sm:$0xf]
    %v297 = vunpack.c.l.b16 %v265
    %v298 = vunpack.c.l.b16 %v266
    %v299 = vunpack.c.l.b16 %v267
    %v300 = vunpack.c.l.b16 %v268
    %v301 = vunpack.c.l.b16 %v269
    %v302 = vunpack.c.l.b16 %v270
    %v303 = vunpack.c.l.b16 %v271
    %v304 = vunpack.c.l.b16 %v272
    %v305 = vunpack.c.l.b16 %v273
    %v306 = vunpack.c.l.b16 %v274
    %v307 = vunpack.c.l.b16 %v275
    %v308 = vunpack.c.l.b16 %v276
    %v309 = vunpack.c.l.b16 %v277
    %v310 = vunpack.c.l.b16 %v278
    %v311 = vunpack.c.l.b16 %v279
    %v312 = vunpack.c.l.b16 %v280
    %v313 = vpack.c.b16 %v298, %v297
    %v314 = vpack.c.b16 %v300, %v299
    %v315 = vpack.c.b16 %v302, %v301
    %v316 = vpack.c.b16 %v304, %v303
    %v317 = vpack.c.b16 %v306, %v305
    %v318 = vpack.c.b16 %v308, %v307
    %v319 = vpack.c.b16 %v310, %v309
    %v320 = vpack.c.b16 %v312, %v311
    %329 = vmatprep.subr.bf16.mxu0 0
    %330 = vmatpush1.bf16.msra.mxu0 %v313
    %331 = vmatprep.subr.bf16.mxu0 0
    %332 = vmatpush1.bf16.msra.mxu0 %v314
    %333 = vmatprep.subr.bf16.mxu0 0
    %334 = vmatpush1.bf16.msra.mxu0 %v315
    %335 = vmatprep.subr.bf16.mxu0 0
    %336 = vmatpush1.bf16.msra.mxu0 %v316
    %337 = vmatprep.subr.bf16.mxu0 0
    %338 = vmatpush1.bf16.msra.mxu0 %v317
    %339 = vmatprep.subr.bf16.mxu0 0
    %340 = vmatpush1.bf16.msra.mxu0 %v318
    %341 = vmatprep.subr.bf16.mxu0 0
    %342 = vmatpush1.bf16.msra.mxu0 %v319
    %343 = vmatprep.subr.bf16.mxu0 0
    %344 = vmatpush1.bf16.msra.mxu0 %v320
    %345 = vmatprep.subr.bf16.mxu0 0
    %346 = vmatpush1.bf16.msra.mxu0 0
    %347 = vmatprep.subr.bf16.mxu0 0
    %348 = vmatpush1.bf16.msra.mxu0 0
    %349 = vmatprep.subr.bf16.mxu0 0
    %350 = vmatpush1.bf16.msra.mxu0 0
    %351 = vmatprep.subr.bf16.mxu0 0
    %352 = vmatpush1.bf16.msra.mxu0 0
    %353 = vmatprep.subr.bf16.mxu0 0
    %354 = vmatpush1.bf16.msra.mxu0 0
    %355 = vmatprep.subr.bf16.mxu0 0
    %356 = vmatpush1.bf16.msra.mxu0 0
    %357 = vmatprep.subr.bf16.mxu0 0
    %358 = vmatpush1.bf16.msra.mxu0 0
    %359 = vmatprep.subr.bf16.mxu0 0
    %360 = vmatpush1.bf16.msra.mxu0 0
    %361 = vmatprep.mubr.bf16.mxu0 0
    %362 = vmatmul.mubr.bf16.gmra.mrb[0].mxu0 %v264
    %v363 = vpop.f32.mrb[0].mxu0
    %v364 = vadd.f32 0.0, %v363
    %v365 = vpop.f32.mrb[0].mxu0
    %v366 = vpop.f32.mrb[0].mxu0
    %v367 = vadd.f32 0.0, %v366
    %v368 = vpop.f32.mrb[0].mxu0
    %369 = vdwg.mxu0
    %p370 = scmp.eq.s32.totalorder 0, 0
    // Predicated region
    $region50: #{tpu_custom_call.1} parent=1 // pred_check
      %p371 = pneg %p370
    $region51: #{tpu_custom_call.1} parent=1 // pred_check_branch
      %373 = sbr.rel (%p371) target = $region53
    $region52: #{tpu_custom_call.1} parent=1 // pred_region
      %374 = vst [vmem:[#allocation2] sm:$0xff] 0.0
      %375 = vst [vmem:[#allocation2 + $0x8] sm:$0xff] 0.0
    $region53: #{tpu_custom_call.1} parent=1 // pred_fallthru
      _
    %v376 = vld [vmem:[#allocation2] sm:$0xff]
    %v377 = vld [vmem:[#allocation2 + $0x8] sm:$0xff]
    %v378 = vadd.f32 %v376, %v364
    %v379 = vadd.f32 %v377, %v367
    %380 = vst [vmem:[#allocation2] sm:$0xff] %v378
    %381 = vst [vmem:[#allocation2 + $0x8] sm:$0xff] %v379
    // Predicated region
    $region54: #{tpu_custom_call.1} parent=1 // pred_check
      %p382 = pneg %p370
    $region55: #{tpu_custom_call.1} parent=1 // pred_check_branch
      %384 = sbr.rel (%p382) target = $region57
    $region56: #{tpu_custom_call.1} parent=1 // pred_region
      %v386 = vlaneseq
      %v387 = vshrl.u32 %v386, 7
      %v388 = vsub.s32 0, %v387
      %v389 = vrot.slane %v134, %v388
      %v391 = vmul.f32 %v86, %v389
      %v392 = vmul.f32 %v87, %v389
      %v394 = vlaneseq
      %v395 = vshrl.u32 %v394, 7
      %v396 = vsub.s32 0, %v395
      %v397 = vrot.slane %v135, %v396
      %v399 = vmul.f32 %v130, %v397
      %v400 = vmul.f32 %v131, %v397
      %v401 = vadd.f32 %v391, %v399
      %v402 = vadd.f32 %v392, %v400
      %v403 = vpack.c.bf16 %v402, %v401
      %v404 = vld [vmem:[#allocation9] sm:$0xf]
      %v405 = vld [vmem:[#allocation9 + $0x4] sm:$0xf]
      %v406 = vld [vmem:[#allocation9 + $0x8] sm:$0xf]
      %v407 = vld [vmem:[#allocation9 + $0xc] sm:$0xf]
      %v408 = vld [vmem:[#allocation9 + $0x10] sm:$0xf]
      %v409 = vld [vmem:[#allocation9 + $0x14] sm:$0xf]
      %v410 = vld [vmem:[#allocation9 + $0x18] sm:$0xf]
      %v411 = vld [vmem:[#allocation9 + $0x1c] sm:$0xf]
      %v412 = vld [vmem:[#allocation9 + $0x20] sm:$0xf]
      %v413 = vld [vmem:[#allocation9 + $0x24] sm:$0xf]
      %v414 = vld [vmem:[#allocation9 + $0x28] sm:$0xf]
      %v415 = vld [vmem:[#allocation9 + $0x2c] sm:$0xf]
      %v416 = vld [vmem:[#allocation9 + $0x30] sm:$0xf]
      %v417 = vld [vmem:[#allocation9 + $0x34] sm:$0xf]
      %v418 = vld [vmem:[#allocation9 + $0x38] sm:$0xf]
      %v419 = vld [vmem:[#allocation9 + $0x3c] sm:$0xf]
      %v436 = vunpack.c.l.b16 %v404
      %v437 = vunpack.c.l.b16 %v405
      %v438 = vunpack.c.l.b16 %v406
      %v439 = vunpack.c.l.b16 %v407
      %v440 = vunpack.c.l.b16 %v408
      %v441 = vunpack.c.l.b16 %v409
      %v442 = vunpack.c.l.b16 %v410
      %v443 = vunpack.c.l.b16 %v411
      %v444 = vunpack.c.l.b16 %v412
      %v445 = vunpack.c.l.b16 %v413
      %v446 = vunpack.c.l.b16 %v414
      %v447 = vunpack.c.l.b16 %v415
      %v448 = vunpack.c.l.b16 %v416
      %v449 = vunpack.c.l.b16 %v417
      %v450 = vunpack.c.l.b16 %v418
      %v451 = vunpack.c.l.b16 %v419
      %v452 = vpack.c.b16 %v437, %v436
      %v453 = vpack.c.b16 %v439, %v438
      %v454 = vpack.c.b16 %v441, %v440
      %v455 = vpack.c.b16 %v443, %v442
      %v456 = vpack.c.b16 %v445, %v444
      %v457 = vpack.c.b16 %v447, %v446
      %v458 = vpack.c.b16 %v449, %v448
      %v459 = vpack.c.b16 %v451, %v450
      %468 = vmatprep.subr.bf16.mxu0 0
      %469 = vmatpush1.bf16.msra.mxu0 %v452
      %470 = vmatprep.subr.bf16.mxu0 0
      %471 = vmatpush1.bf16.msra.mxu0 %v453
      %472 = vmatprep.subr.bf16.mxu0 0
      %473 = vmatpush1.bf16.msra.mxu0 %v454
      %474 = vmatprep.subr.bf16.mxu0 0
      %475 = vmatpush1.bf16.msra.mxu0 %v455
      %476 = vmatprep.subr.bf16.mxu0 0
      %477 = vmatpush1.bf16.msra.mxu0 %v456
      %478 = vmatprep.subr.bf16.mxu0 0
      %479 = vmatpush1.bf16.msra.mxu0 %v457
      %480 = vmatprep.subr.bf16.mxu0 0
      %481 = vmatpush1.bf16.msra.mxu0 %v458
      %482 = vmatprep.subr.bf16.mxu0 0
      %483 = vmatpush1.bf16.msra.mxu0 %v459
      %484 = vmatprep.subr.bf16.mxu0 0
      %485 = vmatpush1.bf16.msra.mxu0 0
      %486 = vmatprep.subr.bf16.mxu0 0
      %487 = vmatpush1.bf16.msra.mxu0 0
      %488 = vmatprep.subr.bf16.mxu0 0
      %489 = vmatpush1.bf16.msra.mxu0 0
      %490 = vmatprep.subr.bf16.mxu0 0
      %491 = vmatpush1.bf16.msra.mxu0 0
      %492 = vmatprep.subr.bf16.mxu0 0
      %493 = vmatpush1.bf16.msra.mxu0 0
      %494 = vmatprep.subr.bf16.mxu0 0
      %495 = vmatpush1.bf16.msra.mxu0 0
      %496 = vmatprep.subr.bf16.mxu0 0
      %497 = vmatpush1.bf16.msra.mxu0 0
      %498 = vmatprep.subr.bf16.mxu0 0
      %499 = vmatpush1.bf16.msra.mxu0 0
      %500 = vmatprep.mubr.bf16.mxu0 0
      %501 = vmatmul.mubr.bf16.gmra.mrb[0].mxu0 %v403
      %v502 = vpop.f32.mrb[0].mxu0
      %v503 = vadd.f32 0.0, %v502
      %v504 = vpop.f32.mrb[0].mxu0
      %v505 = vpop.f32.mrb[0].mxu0
      %v506 = vadd.f32 0.0, %v505
      %v507 = vpop.f32.mrb[0].mxu0
      %508 = vdwg.mxu0
      %v509 = vxor.u32 %v503, 2147483648
      %v510 = vxor.u32 %v506, 2147483648
      %v511 = vmul.f32 %v509, 1.442695
      %v512 = vpow.pop %v511
      %v513 = vmul.f32 %v510, 1.442695
      %v514 = vpow.pop %v513
      %v515 = vadd.f32 %v512, 1.0
      %v516 = vadd.f32 %v514, 1.0
      %v517 = vrcp.pop %v515
      %v518 = vmul.f32 1.0, %v517
      %v519 = vrcp.pop %v516
      %v520 = vmul.f32 1.0, %v519
      %v521 = vld [vmem:[#allocation2] sm:$0xff]
      %v522 = vld [vmem:[#allocation2 + $0x8] sm:$0xff]
      %v523 = vmul.f32 %v518, %v521
      %v524 = vmul.f32 %v520, %v522
      %525 = vst [vmem:[#allocation11] sm:$0xff] %v523
      %526 = vst [vmem:[#allocation11 + $0x8] sm:$0xff] %v524
    $region57: #{tpu_custom_call.1} parent=1 // pred_fallthru
      _
    // Predicated region
    $region58: #{tpu_custom_call.1} parent=1 // pred_check
      _
    $region59: #{tpu_custom_call.1} parent=1 // pred_check_branch
      %528 = sbr.rel (0) target = $region61
    $region60: #{tpu_custom_call.1} parent=1 // pred_region
      %s530 = ssub.s32 256, 256
      %531 = vsyncadd [#allocation5], %s530
      %s532 = sshll.u32 [#allocation11], 4
      %s533 = int_to_ptr.vmem [resolvable:$true] %s532
      %538 = dma.vmem_to_hbm [thread:$0]  %s533, 256, %s8, [#allocation5], 128, 128, 8
    $region61: #{tpu_custom_call.1} parent=1 // pred_fallthru
      _
    // Predicated region
    $region62: #{tpu_custom_call.1} parent=1 // pred_check
      _
    $region63: #{tpu_custom_call.1} parent=1 // pred_check_branch
      %540 = sbr.rel (0) target = $region65
    $region64: #{tpu_custom_call.1} parent=1 // pred_region
      %541 = dma.done [#allocation5], 256
    $region65: #{tpu_custom_call.1} parent=1 // pred_fallthru
      _
    %542 = vsyncpa [#allocation4], 1
    %543 = vsyncpa [#allocation7], 1
    %544 = vsyncpa [#allocation10], 1
    %545 = vsyncpa [#allocation5], 1

</llo_original>
